<compile_context>
chip_gen: v7x
topology: tpu7x:2x2x1
jax: 0.10.0
libtpu: 0.0.40
codegen_flags: <defaults>
</compile_context>

<pallas_src>
import math

import jax
import jax.numpy as jnp
from jax.experimental import pallas as pl
from jax.experimental.pallas import tpu as pltpu

TWO_PI = 2.0 * math.pi


def _round_up(n, m):
    return ((n + m - 1) // m) * m


def _sinusoidal_kernel(x_ref, w_ref, sin_ref, cos_ref):
    # x_ref: (B_tile, 1) f32, w_ref: (1, H) f32
    # sin_ref / cos_ref: (B_tile, H) -- lane-dense, unmasked stores.
    x = x_ref[...]                      # (B_tile, 1)
    w_scaled = w_ref[...] * TWO_PI      # (1, H): one small multiply per tile
    freq = x * w_scaled                 # (B_tile, H): single broadcast multiply
    sin_ref[...] = jnp.sin(freq).astype(sin_ref.dtype)
    cos_ref[...] = jnp.cos(freq).astype(cos_ref.dtype)


def learned_sinusoidal_pos_emb(x, weights, *, b_tile=512, out_dtype=jnp.float32):
    """x: (B,) -> (B, dim + 1), columns = [x | sin(freq) | cos(freq)]."""
    b = x.shape[0]
    half = weights.shape[0]

    x32 = x.astype(jnp.float32)
    w2d = weights.reshape(1, half).astype(jnp.float32)

    # Batch tile: multiple of 8 sublanes, capped at b_tile; pad B to a whole
    # number of tiles so every grid step sees a full block.
    blk = min(b_tile, _round_up(b, 8))
    b_pad = _round_up(b, blk)
    x2d = jnp.pad(x32, (0, b_pad - b)).reshape(b_pad, 1)

    sin_out, cos_out = pl.pallas_call(
        _sinusoidal_kernel,
        out_shape=(
            jax.ShapeDtypeStruct((b_pad, half), out_dtype),
            jax.ShapeDtypeStruct((b_pad, half), out_dtype),
        ),
        grid=(b_pad // blk,),
        in_specs=[
            pl.BlockSpec((blk, 1), lambda i: (i, 0)),     # x tile per step
            pl.BlockSpec((1, half), lambda i: (0, 0)),    # weights resident
        ],
        out_specs=(
            pl.BlockSpec((blk, half), lambda i: (i, 0)),  # sin slab
            pl.BlockSpec((blk, half), lambda i: (i, 0)),  # cos slab
        ),
        compiler_params=pltpu.CompilerParams(
            dimension_semantics=("parallel",),
        ),
    )(x2d, w2d)

    # Stitch the leading x column back on in the wrapper (cheap XLA concat);
    # drop batch padding.
    return jnp.concatenate(
        [x32[:, None].astype(out_dtype), sin_out[:b], cos_out[:b]], axis=-1
    )


def _reference(x, weights):
    freq = jnp.einsum('b,d->bd', x, weights) * TWO_PI
    return jnp.concatenate([x[:, None], jnp.sin(freq), jnp.cos(freq)], axis=-1)


if __name__ == "__main__":
    key = jax.random.PRNGKey(0)
    kx, kw = jax.random.split(key)

    batch = 8
    dim = 32                      # must be even; half = 16
    assert dim % 2 == 0

    # Deterministic "parameter" init (stand-in for torch.randn(dim//2)).
    weights = jax.random.normal(kw, (dim // 2,), dtype=jnp.float32)
    # Example timestep-like input x of shape (B,).
    x = jax.random.normal(kx, (batch,), dtype=jnp.float32)

    out = learned_sinusoidal_pos_emb(x, weights)
    out = jax.block_until_ready(out)

    ref = _reference(x, weights)
    assert out.shape == (batch, dim + 1), out.shape
    assert jnp.allclose(out, ref, atol=1e-5, rtol=1e-5), "mismatch vs reference"

    print("KERNEL_OK")
</pallas_src>

<mosaic_0001>
module attributes {stable_mosaic.version = 11 : i64} {
  func.func @_sinusoidal_kernel(%arg0: i32, %arg1: memref<8x1xf32, #tpu.memory_space<vmem>>, %arg2: memref<1x16xf32, #tpu.memory_space<vmem>>, %arg3: memref<8x16xf32, #tpu.memory_space<vmem>>, %arg4: memref<8x16xf32, #tpu.memory_space<vmem>>) attributes {dimension_semantics = [#tpu.dimension_semantics<parallel>], iteration_bounds = array<i64: 1>, scalar_prefetch = 0 : i64, scratch_operands = 0 : i64, tpu.core_type = #tpu.core_type<tc>, window_params = [{transform_indices = @transform_0, window_bounds = array<i64: 8, 1>}, {pipeline_mode = #tpu.pipeline_mode<synchronous>, transform_indices = @transform_1, window_bounds = array<i64: 1, 16>}, {transform_indices = @transform_2, window_bounds = array<i64: 8, 16>}, {transform_indices = @transform_3, window_bounds = array<i64: 8, 16>}]} {
    %c0 = arith.constant 0 : index
    %c0_0 = arith.constant 0 : index
    %0 = vector.load %arg1[%c0, %c0_0] : memref<8x1xf32, #tpu.memory_space<vmem>>, vector<8x1xf32>
    %c0_1 = arith.constant 0 : index
    %c0_2 = arith.constant 0 : index
    %1 = vector.load %arg2[%c0_1, %c0_2] : memref<1x16xf32, #tpu.memory_space<vmem>>, vector<1x16xf32>
    %cst = arith.constant 6.28318548 : f32
    %2 = vector.broadcast %cst : f32 to vector<1x16xf32>
    %3 = arith.mulf %1, %2 : vector<1x16xf32>
    %4 = vector.broadcast %0 : vector<8x1xf32> to vector<8x16xf32>
    %5 = vector.broadcast %3 : vector<1x16xf32> to vector<8x16xf32>
    %6 = arith.mulf %4, %5 : vector<8x16xf32>
    %7 = math.sin %6 : vector<8x16xf32>
    %c0_3 = arith.constant 0 : index
    %c0_4 = arith.constant 0 : index
    %8 = vector.load %arg3[%c0_3, %c0_4] : memref<8x16xf32, #tpu.memory_space<vmem>>, vector<8x16xf32>
    tpu.vector_store %arg3[%c0_3, %c0_4], %7 {strides = array<i32>} : memref<8x16xf32, #tpu.memory_space<vmem>>, vector<8x16xf32>,
    %9 = math.cos %6 : vector<8x16xf32>
    %c0_5 = arith.constant 0 : index
    %c0_6 = arith.constant 0 : index
    %10 = vector.load %arg4[%c0_5, %c0_6] : memref<8x16xf32, #tpu.memory_space<vmem>>, vector<8x16xf32>
    tpu.vector_store %arg4[%c0_5, %c0_6], %9 {strides = array<i32>} : memref<8x16xf32, #tpu.memory_space<vmem>>, vector<8x16xf32>,
    return
  }
  func.func @transform_0(%arg0: i32) -> (i32, i32) {
    %c0_i32 = arith.constant 0 : i32
    %c0_i32_0 = arith.constant 0 : i32
    return %arg0, %c0_i32 : i32, i32
  }
  func.func @transform_1(%arg0: i32) -> (i32, i32) {
    %c0_i32 = arith.constant 0 : i32
    %c0_i32_0 = arith.constant 0 : i32
    %c0_i32_1 = arith.constant 0 : i32
    return %c0_i32, %c0_i32_0 : i32, i32
  }
  func.func @transform_2(%arg0: i32) -> (i32, i32) {
    %c0_i32 = arith.constant 0 : i32
    %c0_i32_0 = arith.constant 0 : i32
    return %arg0, %c0_i32 : i32, i32
  }
  func.func @transform_3(%arg0: i32) -> (i32, i32) {
    %c0_i32 = arith.constant 0 : i32
    %c0_i32_0 = arith.constant 0 : i32
    return %arg0, %c0_i32 : i32, i32
  }
}

</mosaic_0001>

<llo_original>
// kernel: tpu_custom_call.1
$region0: #{tpu_custom_call.1}
  #allocation0 [shape = 'u32[]', space=smem, size = 0x4, offset = 0x4, fixed_abs, tag = 'smem constant byte address 0x4 - core index']
  #allocation1 [shape = 'u32[144,128]{1,0:T(1,128)}', space=vmem, size = 0x12000, scoped, tag = 'internal scratch']
  %s0 = inlined_call_operand.vmem [shape: f32[8,1], index: 0, kind: input, shape index: {}]
  %s1 = inlined_call_operand.vmem [shape: f32[1,16], index: 1, kind: input, shape index: {}]
  %s2 = inlined_call_operand.hbm [shape: f32[8,16], index: 2, kind: output, shape index: {0}]
  %s3 = inlined_call_operand.hbm [shape: f32[8,16], index: 3, kind: output, shape index: {1}]
  %4 = xla_tuple %s2, %s3
  %s5 = sld [smem:[#allocation0]]
  $region26: #{tpu_custom_call.1} parent=0
    _
  %s7 = ssub.s32 1, %s5
  %s8 = scalar_select 0, %s7, %s5
  $region1: #{tpu_custom_call.1} parent=0
    #allocation2 [shape = 'u8[4096]{0}', space=vmem, size = 0x1000, scoped, tag = 'output window, operand 0, single buffered']
    #allocation3 [shape = 's32[1]{0}', space=sflag, size = 0x4, scoped, tag = 'scoped memory for tpu_custom_call.1']
    #allocation4 [shape = 'u8[4096]{0}', space=vmem, size = 0x1000, scoped, tag = 'output window, operand 1, single buffered']
    #allocation5 [shape = 's32[1]{0}', space=sflag, size = 0x4, scoped, tag = 'scoped memory for tpu_custom_call.1']
    %9 = vsyncpa [#allocation3], 0
    %10 = vsyncpa [#allocation5], 0
    // Predicated region
    $region2: #{tpu_custom_call.1} parent=1 // pred_check
      _
    $region3: #{tpu_custom_call.1} parent=1 // pred_check_branch
      %12 = sbr.rel (0) target = $region5
    $region4: #{tpu_custom_call.1} parent=1 // pred_region
      _
    $region5: #{tpu_custom_call.1} parent=1 // pred_fallthru
      _
    // Predicated region
    $region6: #{tpu_custom_call.1} parent=1 // pred_check
      _
    $region7: #{tpu_custom_call.1} parent=1 // pred_check_branch
      %14 = sbr.rel (0) target = $region9
    $region8: #{tpu_custom_call.1} parent=1 // pred_region
      _
    $region9: #{tpu_custom_call.1} parent=1 // pred_fallthru
      _
    %v15 = vld [vmem:[%s0] sm:$0xff]
    %v16 = vld [vmem:[%s1] sm:$0x1]
    %v17 = vmul.f32 %v16, 6.2831855
    %19 = vset.pattern.permute.xlu0 0
    %20 = vperm.xlu0 %19, %v15
    %v21 = vpop.permute.xlu0 %20
    %v24 = vlaneseq
    %v25 = vshrl.u32 %v24, 7
    %v26 = vsub.s32 0, %v25
    %v27 = vrot.slane %v17, %v26
    %v29 = vmul.f32 %v21, %v27
    %v30 = vand.u32 2147483647, %v29
    %vm31 = vcmp.le.f32.partialorder %v30, 0.7853982
    %vm32 = vcmp.lt.s32.totalorder %v29, 0
    %v33 = vand.u32 %v29, 2139095040
    %v34 = vshrl.u32 %v33, 23
    %v35 = vsub.s32 %v34, 127
    %v36 = vand.u32 2147483647, %v29
    %v37 = vand.u32 %v36, 8388607
    %v38 = vor.u32 %v37, 8388608
    %v39 = vsub.s32 0, %v38
    %v40 = vadd.s32 %v35, 1
    %vm41 = vcmp.gt.s32.totalorder %v40, 0
    %v42 = vsel %vm41, %v40, 0
    %v43 = vshrl.u32 %v42, 5
    %v44 = vand.u32 %v42, 31
    %v45 = vsub.s32 32, %v44
    %v46 = vshrl.u32 683565275, %v45
    %v47 = vshll.u32 683565275, %v44
    %v48 = vshrl.u32 2475754826, %v45
    %v49 = vor.u32 %v47, %v48
    %v50 = vshll.u32 2475754826, %v44
    %v51 = vshrl.u32 2131351028, %v45
    %v52 = vor.u32 %v50, %v51
    %v53 = vshll.u32 2131351028, %v44
    %v54 = vshrl.u32 2102212464, %v45
    %v55 = vor.u32 %v53, %v54
    %v56 = vshll.u32 2102212464, %v44
    %v57 = vshrl.u32 920167782, %v45
    %v58 = vor.u32 %v56, %v57
    %v59 = vshll.u32 920167782, %v44
    %v60 = vshrl.u32 1326507024, %v45
    %v61 = vor.u32 %v59, %v60
    %vm62 = vcmp.lt.s32.totalorder %v43, 1
    %vm63 = vcmp.lt.s32.totalorder %v43, 2
    %vm64 = vcmp.lt.s32.totalorder %v43, 3
    %vm65 = vcmp.lt.s32.totalorder %v43, 4
    %v66 = vsel %vm62, %v46, %v49
    %v67 = vsel %vm65, %v55, 2102212464
    %v68 = vsel %vm64, %v52, %v67
    %v69 = vsel %vm63, %v66, %v68
    %v70 = vsel %vm62, %v49, %v52
    %v71 = vsel %vm65, %v58, 920167782
    %v72 = vsel %vm64, %v55, %v71
    %v73 = vsel %vm63, %v70, %v72
    %v74 = vsel %vm62, %v52, %v55
    %v75 = vsel %vm65, %v61, 1326507024
    %v76 = vsel %vm64, %v58, %v75
    %v77 = vsel %vm63, %v74, %v76
    %v78 = vshll.u32 %v38, 8
    %v79 = vmul.u32.u64.compose %v78, %v77
    %v80 = vextract.low.u32 %v79
    %v81 = vextract.high.u32 %v79
    %v82 = vmul.u32.u64.compose %v78, %v73
    %v83 = vextract.low.u32 %v82
    %v84 = vextract.high.u32 %v82
    %v85 = vmul.u32 %v78, %v69
    %v86 = vadd.s32 %v81, %v83
    %vm87 = vc.u32 %v81, %v83
    %v88 = vadd.s32 %v84, 1
    %v89 = vsel %vm87, %v88, %v84
    %v90 = vadd.s32 %v85, %v89
    %v91 = vadd.s32 %v90, 536870912
    %v92 = vshrl.u32 %v91, 30
    %v93 = vshll.u32 %v92, 30
    %v94 = vsub.s32 %v90, %v93
    %vm95 = vcmp.lt.s32.totalorder %v94, 0
    %v96 = vsub.s32 0, %v94
    %v97 = vsel %vm95, %v96, %v94
    %v98 = vclz %v97
    %v99 = vsub.s32 %v98, 2
    %vm100 = vcmp.gt.s32.totalorder 0, %v99
    %v101 = vsel %vm100, 0, %v99
    %v102 = vsub.s32 32, %v101
    %v103 = vshll.u32 %v94, %v101
    %v104 = vshrl.u32 %v86, %v102
    %v105 = vor.u32 %v103, %v104
    %v106 = vsub.s32 4294967266, %v101
    %v107 = vadd.s32 %v106, 127
    %v108 = vshll.u32 %v107, 23
    %v109 = vor.u32 4788187, %v108
    %v110 = vand.u32 2147483647, %v109
    %v112 = vcvt.s32.f32 %v105
    %v113 = vmul.f32 %v112, %v110
    %v114 = vxor.u32 %v113, 2147483648
    %v115 = vsel %vm32, %v114, %v113
    %v116 = vsub.s32 4, %v92
    %v117 = vsel %vm32, %v116, %v92
    %v118 = vsel %vm31, %v29, %v115
    %v119 = vsel %vm31, 0, %v117
    %v120 = vcosq.f32.pop %v118
    %v121 = vsinq.f32.pop %v118
    %vm122 = vweird.f32 %v29
    %v123 = vadd.s32 %v119, 3
    %v124 = vand.u32 %v123, 3
    %vm125 = vcmp.lt.s32.totalorder %v124, 2
    %vm126 = vcmp.eq.s32.totalorder %v124, 0
    %v127 = vxor.u32 %v121, 2147483648
    %v128 = vsel %vm126, %v120, %v127
    %vm129 = vcmp.eq.s32.totalorder %v124, 2
    %v130 = vxor.u32 %v120, 2147483648
    %v131 = vsel %vm129, %v130, %v121
    %v132 = vsel %vm125, %v128, %v131
    %v133 = vsel %vm122, nan, %v132
    %vm134 = vcmask 130048
    %135 = vst.msk [vmem:[#allocation2] sm:$0xff] %vm134, %v133
    %v136 = vand.u32 2147483647, %v29
    %vm137 = vcmp.le.f32.partialorder %v136, 0.7853982
    %vm138 = vcmp.lt.s32.totalorder %v29, 0
    %v139 = vand.u32 %v29, 2139095040
    %v140 = vshrl.u32 %v139, 23
    %v141 = vsub.s32 %v140, 127
    %v142 = vand.u32 2147483647, %v29
    %v143 = vand.u32 %v142, 8388607
    %v144 = vor.u32 %v143, 8388608
    %v145 = vsub.s32 0, %v144
    %v146 = vadd.s32 %v141, 1
    %vm147 = vcmp.gt.s32.totalorder %v146, 0
    %v148 = vsel %vm147, %v146, 0
    %v149 = vshrl.u32 %v148, 5
    %v150 = vand.u32 %v148, 31
    %v151 = vsub.s32 32, %v150
    %v152 = vshrl.u32 683565275, %v151
    %v153 = vshll.u32 683565275, %v150
    %v154 = vshrl.u32 2475754826, %v151
    %v155 = vor.u32 %v153, %v154
    %v156 = vshll.u32 2475754826, %v150
    %v157 = vshrl.u32 2131351028, %v151
    %v158 = vor.u32 %v156, %v157
    %v159 = vshll.u32 2131351028, %v150
    %v160 = vshrl.u32 2102212464, %v151
    %v161 = vor.u32 %v159, %v160
    %v162 = vshll.u32 2102212464, %v150
    %v163 = vshrl.u32 920167782, %v151
    %v164 = vor.u32 %v162, %v163
    %v165 = vshll.u32 920167782, %v150
    %v166 = vshrl.u32 1326507024, %v151
    %v167 = vor.u32 %v165, %v166
    %vm168 = vcmp.lt.s32.totalorder %v149, 1
    %vm169 = vcmp.lt.s32.totalorder %v149, 2
    %vm170 = vcmp.lt.s32.totalorder %v149, 3
    %vm171 = vcmp.lt.s32.totalorder %v149, 4
    %v172 = vsel %vm168, %v152, %v155
    %v173 = vsel %vm171, %v161, 2102212464
    %v174 = vsel %vm170, %v158, %v173
    %v175 = vsel %vm169, %v172, %v174
    %v176 = vsel %vm168, %v155, %v158
    %v177 = vsel %vm171, %v164, 920167782
    %v178 = vsel %vm170, %v161, %v177
    %v179 = vsel %vm169, %v176, %v178
    %v180 = vsel %vm168, %v158, %v161
    %v181 = vsel %vm171, %v167, 1326507024
    %v182 = vsel %vm170, %v164, %v181
    %v183 = vsel %vm169, %v180, %v182
    %v184 = vshll.u32 %v144, 8
    %v185 = vmul.u32.u64.compose %v184, %v183
    %v186 = vextract.low.u32 %v185
    %v187 = vextract.high.u32 %v185
    %v188 = vmul.u32.u64.compose %v184, %v179
    %v189 = vextract.low.u32 %v188
    %v190 = vextract.high.u32 %v188
    %v191 = vmul.u32 %v184, %v175
    %v192 = vadd.s32 %v187, %v189
    %vm193 = vc.u32 %v187, %v189
    %v194 = vadd.s32 %v190, 1
    %v195 = vsel %vm193, %v194, %v190
    %v196 = vadd.s32 %v191, %v195
    %v197 = vadd.s32 %v196, 536870912
    %v198 = vshrl.u32 %v197, 30
    %v199 = vshll.u32 %v198, 30
    %v200 = vsub.s32 %v196, %v199
    %vm201 = vcmp.lt.s32.totalorder %v200, 0
    %v202 = vsub.s32 0, %v200
    %v203 = vsel %vm201, %v202, %v200
    %v204 = vclz %v203
    %v205 = vsub.s32 %v204, 2
    %vm206 = vcmp.gt.s32.totalorder 0, %v205
    %v207 = vsel %vm206, 0, %v205
    %v208 = vsub.s32 32, %v207
    %v209 = vshll.u32 %v200, %v207
    %v210 = vshrl.u32 %v192, %v208
    %v211 = vor.u32 %v209, %v210
    %v212 = vsub.s32 4294967266, %v207
    %v213 = vadd.s32 %v212, 127
    %v214 = vshll.u32 %v213, 23
    %v215 = vor.u32 4788187, %v214
    %v216 = vand.u32 2147483647, %v215
    %v218 = vcvt.s32.f32 %v211
    %v219 = vmul.f32 %v218, %v216
    %v220 = vxor.u32 %v219, 2147483648
    %v221 = vsel %vm138, %v220, %v219
    %v222 = vsub.s32 4, %v198
    %v223 = vsel %vm138, %v222, %v198
    %v224 = vsel %vm137, %v29, %v221
    %v225 = vsel %vm137, 0, %v223
    %v226 = vcosq.f32.pop %v224
    %v227 = vsinq.f32.pop %v224
    %vm228 = vweird.f32 %v29
    %v229 = vand.u32 %v225, 3
    %vm230 = vcmp.lt.s32.totalorder %v229, 2
    %vm231 = vcmp.eq.s32.totalorder %v229, 0
    %v232 = vxor.u32 %v227, 2147483648
    %v233 = vsel %vm231, %v226, %v232
    %vm234 = vcmp.eq.s32.totalorder %v229, 2
    %v235 = vxor.u32 %v226, 2147483648
    %v236 = vsel %vm234, %v235, %v227
    %v237 = vsel %vm230, %v233, %v236
    %v238 = vsel %vm228, nan, %v237
    %239 = vst.msk [vmem:[#allocation4] sm:$0xff] %vm134, %v238
    // Predicated region
    $region10: #{tpu_custom_call.1} parent=1 // pred_check
      _
    $region11: #{tpu_custom_call.1} parent=1 // pred_check_branch
      %241 = sbr.rel (0) target = $region13
    $region12: #{tpu_custom_call.1} parent=1 // pred_region
      %s243 = ssub.s32 128, 128
      %244 = vsyncadd [#allocation3], %s243
      %s246 = sshll.u32 [#allocation2], 4
      %s247 = int_to_ptr.vmem [resolvable:$true] %s246
      %249 = dma.vmem_to_hbm [thread:$0]  %s247, 128, %s2, [#allocation3]
    $region13: #{tpu_custom_call.1} parent=1 // pred_fallthru
      _
    // Predicated region
    $region14: #{tpu_custom_call.1} parent=1 // pred_check
      _
    $region15: #{tpu_custom_call.1} parent=1 // pred_check_branch
      %251 = sbr.rel (0) target = $region17
    $region16: #{tpu_custom_call.1} parent=1 // pred_region
      %s253 = ssub.s32 128, 128
      %254 = vsyncadd [#allocation5], %s253
      %s256 = sshll.u32 [#allocation4], 4
      %s257 = int_to_ptr.vmem [resolvable:$true] %s256
      %259 = dma.vmem_to_hbm [thread:$0]  %s257, 128, %s3, [#allocation5]
    $region17: #{tpu_custom_call.1} parent=1 // pred_fallthru
      _
    // Predicated region
    $region18: #{tpu_custom_call.1} parent=1 // pred_check
      _
    $region19: #{tpu_custom_call.1} parent=1 // pred_check_branch
      %261 = sbr.rel (0) target = $region21
    $region20: #{tpu_custom_call.1} parent=1 // pred_region
      %262 = dma.done [#allocation3], 128
    $region21: #{tpu_custom_call.1} parent=1 // pred_fallthru
      _
    // Predicated region
    $region22: #{tpu_custom_call.1} parent=1 // pred_check
      _
    $region23: #{tpu_custom_call.1} parent=1 // pred_check_branch
      %264 = sbr.rel (0) target = $region25
    $region24: #{tpu_custom_call.1} parent=1 // pred_region
      %265 = dma.done [#allocation5], 128
    $region25: #{tpu_custom_call.1} parent=1 // pred_fallthru
      _
    %266 = vsyncpa [#allocation3], 1
    %267 = vsyncpa [#allocation5], 1

</llo_original>
